<compile_context>
chip_gen: v5e
topology: v5e:2x2
jax: 0.10.0
libtpu: 0.0.40
codegen_flags: <defaults>
</compile_context>

<pallas_src>
import jax
import jax.numpy as jnp
from jax.experimental import pallas as pl
from jax.experimental.pallas import tpu as pltpu

_LANE = 128          # lane width: last dim of every block
_TILE_ROWS = 1024    # 1024 x 128 x 4B = 512 KiB per f32 buffer (safe on v5e/v6e/v7x)


def _goal_curriculum_kernel(s_ref, goal_ref):
    # Elementwise pass-through on the VPU: goal state == agent state s_i.
    goal_ref[...] = s_ref[...]


@jax.jit
def goal_curriculum_forward(s_i: jax.Array) -> jax.Array:
    """Pallas wrapper for GoalCurriculum.forward.

    s_i: [batch, state_dim] agent state (any shape works; it is flattened).
    returns: goal state with the same shape/dtype as s_i (identity placeholder).
    """
    orig_shape = s_i.shape
    total = s_i.size

    # ---- lane-dense re-layout: flatten, pad, view as [rows, 128] ------------
    rows_needed = pl.cdiv(total, _LANE)
    # Tile rows: multiple of 8 (f32 sublane rule), capped at _TILE_ROWS.
    tile_rows = min(_TILE_ROWS, max(8, ((rows_needed + 7) // 8) * 8))
    rows = pl.cdiv(rows_needed, tile_rows) * tile_rows
    padded_len = rows * _LANE

    flat = jnp.ravel(s_i)
    if padded_len != total:
        flat = jnp.pad(flat, (0, padded_len - total))
    x2d = flat.reshape(rows, _LANE)

    # ---- tiled, double-buffered identity copy -------------------------------
    spec = pl.BlockSpec((tile_rows, _LANE), lambda i: (i, 0))
    out2d = pl.pallas_call(
        _goal_curriculum_kernel,
        out_shape=jax.ShapeDtypeStruct((rows, _LANE), s_i.dtype),
        grid=(rows // tile_rows,),
        in_specs=[spec],
        out_specs=spec,
        # Write back into the (intermediate) input buffer: no second HBM alloc.
        input_output_aliases={0: 0},
        compiler_params=pltpu.CompilerParams(
            dimension_semantics=("parallel",),
        ),
    )(x2d)

    # ---- undo the lane-dense re-layout --------------------------------------
    return out2d.reshape(-1)[:total].reshape(orig_shape)


if __name__ == "__main__":
    key = jax.random.PRNGKey(0)
    batch, state_dim = 8, 32  # small agent-state shape consistent with forward(s_i)
    s_i = jax.random.normal(key, (batch, state_dim), dtype=jnp.float32)

    goal = goal_curriculum_forward(s_i)
    jax.block_until_ready(goal)

    # Sanity check: identity pass-through semantics.
    assert goal.shape == s_i.shape and goal.dtype == s_i.dtype
    assert bool(jnp.allclose(goal, s_i))

    print("KERNEL_OK")
</pallas_src>

<mosaic_0001>
module attributes {stable_mosaic.version = 11 : i64} {
  func.func @_goal_curriculum_kernel(%arg0: i32, %arg1: memref<8x128xf32, #tpu.memory_space<vmem>>, %arg2: memref<8x128xf32, #tpu.memory_space<vmem>>) attributes {dimension_semantics = [#tpu.dimension_semantics<parallel>], iteration_bounds = array<i64: 1>, scalar_prefetch = 0 : i64, scratch_operands = 0 : i64, tpu.core_type = #tpu.core_type<tc>, window_params = [{transform_indices = @transform_0, window_bounds = array<i64: 8, 128>}, {transform_indices = @transform_1, window_bounds = array<i64: 8, 128>}]} {
    %c0 = arith.constant 0 : index
    %c0_0 = arith.constant 0 : index
    %0 = vector.load %arg1[%c0, %c0_0] : memref<8x128xf32, #tpu.memory_space<vmem>>, vector<8x128xf32>
    %c0_1 = arith.constant 0 : index
    %c0_2 = arith.constant 0 : index
    %1 = vector.load %arg2[%c0_1, %c0_2] : memref<8x128xf32, #tpu.memory_space<vmem>>, vector<8x128xf32>
    tpu.vector_store %arg2[%c0_1, %c0_2], %0 {strides = array<i32>} : memref<8x128xf32, #tpu.memory_space<vmem>>, vector<8x128xf32>,
    return
  }
  func.func @transform_0(%arg0: i32) -> (i32, i32) {
    %c0_i32 = arith.constant 0 : i32
    %c0_i32_0 = arith.constant 0 : i32
    return %arg0, %c0_i32 : i32, i32
  }
  func.func @transform_1(%arg0: i32) -> (i32, i32) {
    %c0_i32 = arith.constant 0 : i32
    %c0_i32_0 = arith.constant 0 : i32
    return %arg0, %c0_i32 : i32, i32
  }
}

</mosaic_0001>

<llo_original>
// kernel: goal_curriculum_forward.1
$region0: #{goal_curriculum_forward.1}
  #allocation0 [shape = 'u32[]', space=smem, size = 0x4, offset = 0x4, fixed_abs, tag = 'smem constant byte address 0x4 - core index']
  #allocation1 [shape = 'u32[72,128]{1,0:T(1,128)}', space=vmem, size = 0x9000, scoped, tag = 'internal scratch']
  %s0 = inlined_call_operand.vmem [shape: f32[8,128], index: 0, kind: input, shape index: {}, may-alias: {0,1}]
  %s1 = inlined_call_operand.vmem [shape: f32[8,128], index: 1, kind: output, shape index: {}, may-alias: {0,1}]
  %s2 = sld [smem:[#allocation0]]
  $region14: #{goal_curriculum_forward.1} parent=0
    _
  %s4 = ssub.s32 1, %s2
  %s5 = scalar_select 0, %s4, %s2
  // Predicated region
  $region2: #{goal_curriculum_forward.1} parent=0 // pred_check
    _
  $region3: #{goal_curriculum_forward.1} parent=0 // pred_check_branch
    %7 = sbr.rel (0) target = $region5
  $region4: #{goal_curriculum_forward.1} parent=0 // pred_region
    _
  $region5: #{goal_curriculum_forward.1} parent=0 // pred_fallthru
    _
  %v8 = vld [vmem:[%s0] sm:$0xff]
  %9 = vst [vmem:[%s1] sm:$0xff] %v8
  // Predicated region
  $region6: #{goal_curriculum_forward.1} parent=0 // pred_check
    _
  $region7: #{goal_curriculum_forward.1} parent=0 // pred_check_branch
    %11 = sbr.rel (0) target = $region9
  $region8: #{goal_curriculum_forward.1} parent=0 // pred_region
    _
  $region9: #{goal_curriculum_forward.1} parent=0 // pred_fallthru
    _
  // Predicated region
  $region10: #{goal_curriculum_forward.1} parent=0 // pred_check
    _
  $region11: #{goal_curriculum_forward.1} parent=0 // pred_check_branch
    %13 = sbr.rel (0) target = $region13
  $region12: #{goal_curriculum_forward.1} parent=0 // pred_region
    _
  $region13: #{goal_curriculum_forward.1} parent=0 // pred_fallthru
    _

</llo_original>
